<compile_context>
chip_gen: v7x
topology: tpu7x:2x2x1
jax: 0.10.0
libtpu: 0.0.40
codegen_flags: <defaults>
</compile_context>

<pallas_src>
import functools

import jax
import jax.numpy as jnp
from jax.experimental import pallas as pl
from jax.experimental.pallas import tpu as pltpu


def conv_block_kernel(x_ref, w_ref, p_ref, o_ref, *, use_act):
    """Processes `nb` batch samples per grid step.

    x_ref: (nb, C_in, L)      activation block (NCL layout)
    w_ref: (C_out, 3*C_in)    lane-dense, tap-major stacked conv weight
    p_ref: (C_out, 3)         packed [bias | gamma | beta]
    o_ref: (nb, C_out, L)
    """
    nb, C_in, L = x_ref.shape
    w = w_ref[...]                       # (C_out, 3*C_in)
    bias = p_ref[:, 0:1]                 # (C_out, 1)
    gamma = p_ref[:, 1:2]
    beta = p_ref[:, 2:3]

    # Hoisted loop invariants.
    lane = jax.lax.broadcasted_iota(jnp.int32, (C_in, L), 1)
    inv_l = 1.0 / float(L)

    # Small static unroll over the samples in this block (nb is capped by the
    # wrapper); every sample is a single (C_out, 3*C_in) x (3*C_in, L) matmul.
    for b in range(nb):
        h = x_ref[b].astype(w.dtype)     # (C_in, L)

        # 3-tap shifted activations with reflect padding of 1:
        #   left[:, l]  = h[:, l-1]  (l == 0   -> h[:, 1])
        #   right[:, l] = h[:, l+1]  (l == L-1 -> h[:, L-2])
        left = jnp.where(lane == 0, h[:, 1:2], pltpu.roll(h, 1, 1))
        right = jnp.where(lane == L - 1, h[:, L - 2:L - 1],
                          pltpu.roll(h, L - 1, 1))

        # Stack taps along the contraction axis -> ONE MXU matmul, K = 3*C_in.
        hs = jnp.concatenate([left, h, right], axis=0)           # (3*C_in, L)
        y = jnp.dot(w, hs, preferred_element_type=jnp.float32)   # (C_out, L)

        y = y + bias  # cancels in InstanceNorm mathematically; kept for fidelity

        # InstanceNorm1d: per-(sample, channel) stats over L, biased var, eps=1e-5.
        mean = jnp.sum(y, axis=1, keepdims=True) * inv_l
        mean_sq = jnp.sum(y * y, axis=1, keepdims=True) * inv_l
        var = jnp.maximum(mean_sq - mean * mean, 0.0)
        scale = jax.lax.rsqrt(var + 1e-5) * gamma
        y = (y - mean) * scale + beta

        if use_act:
            # Mish(y) = y * tanh(softplus(y)) = y * t*(t+2) / (t*(t+2) + 2),
            # t = e^y; one exp on the EUP, guarded against overflow.
            t = jnp.exp(jnp.minimum(y, 20.0))
            u = t * (t + 2.0)
            y = jnp.where(y > 20.0, y, y * (u / (u + 2.0)))

        o_ref[b] = y.astype(o_ref.dtype)


def _pick_batch_block(N, C_in, C_out, L, budget_bytes=8 << 20, max_nb=16):
    """Largest divisor of N (<= max_nb) whose block + intermediates fit VMEM."""
    # Rough f32 footprint per sample: double-buffered in/out blocks plus the
    # shifted-activation / accumulator intermediates inside the kernel.
    per_sample = (2 * 2 * C_in * L * 4) + (2 * 2 * C_out * L * 4) \
                 + (6 * C_in + 4 * C_out) * L * 4
    nb = 1
    for d in range(1, min(N, max_nb) + 1):
        if N % d == 0 and d * per_sample <= budget_bytes:
            nb = d
    return nb


# TODO(synk): ConvTranspose1d (down=False) and training-mode Dropout (drop=True)
# branches of ConvBlock are not implemented; module defaults (down=True,
# drop=False, eval-mode dropout) are.
def conv_block(x, weight, bias, gamma, beta, *, use_act=True,
               conv_dtype=jnp.float32, batch_block=None):
    """ConvBlock forward.

    x:      (N, C_in, L) float32 (NCL, as PyTorch Conv1d). Requires L >= 2;
            best performance when L is a multiple of 128.
    weight: (C_out, C_in, 3)  PyTorch Conv1d weight layout.
    bias, gamma, beta: (C_out,)
    conv_dtype: dtype of the MXU operands (jnp.bfloat16 on v6e/v7x if the
            accuracy budget allows; accumulation stays f32 either way).
    """
    N, C_in, L = x.shape
    C_out = weight.shape[0]

    nb = batch_block if batch_block is not None else _pick_batch_block(
        N, C_in, C_out, L)
    assert N % nb == 0, "batch_block must divide N"

    # Lane-dense weight: w_s[o, k*C_in + i] == weight[o, i, k], matching the
    # [left | center | right] activation stack along the contraction axis.
    w_s = jnp.transpose(weight, (0, 2, 1)).reshape(C_out, 3 * C_in)
    w_s = w_s.astype(conv_dtype)

    # Pack the three per-channel vectors into one small block.
    p = jnp.stack([bias, gamma, beta], axis=1).astype(jnp.float32)  # (C_out, 3)

    kernel = functools.partial(conv_block_kernel, use_act=use_act)

    return pl.pallas_call(
        kernel,
        out_shape=jax.ShapeDtypeStruct((N, C_out, L), x.dtype),
        grid_spec=pltpu.PrefetchScalarGridSpec(
            num_scalar_prefetch=0,
            grid=(N // nb,),
            in_specs=[
                pl.BlockSpec((nb, C_in, L), lambda n: (n, 0, 0)),
                pl.BlockSpec((C_out, 3 * C_in), lambda n: (0, 0)),
                pl.BlockSpec((C_out, 3), lambda n: (0, 0)),
            ],
            out_specs=pl.BlockSpec((nb, C_out, L), lambda n: (n, 0, 0)),
        ),
        compiler_params=pltpu.CompilerParams(
            dimension_semantics=("parallel",),
        ),
    )(x, w_s, p)


def conv_block_ref(x, weight, bias, gamma, beta, use_act=True):
    """Pure-JAX reference with identical semantics (for sanity check)."""
    xp = jnp.concatenate([x[:, :, 1:2], x, x[:, :, -2:-1]], axis=2)  # reflect pad 1
    y = jax.lax.conv_general_dilated(
        xp, weight, window_strides=(1,), padding="VALID",
        dimension_numbers=("NCH", "OIH", "NCH"),
        precision=jax.lax.Precision.HIGHEST)
    y = y + bias[None, :, None]
    mean = jnp.mean(y, axis=2, keepdims=True)
    var = jnp.mean((y - mean) ** 2, axis=2, keepdims=True)
    y = (y - mean) * jax.lax.rsqrt(var + 1e-5)
    y = y * gamma[None, :, None] + beta[None, :, None]
    if use_act:
        y = y * jnp.tanh(jax.nn.softplus(y))
    return y


if __name__ == "__main__":
    key = jax.random.PRNGKey(0)
    kx, kw, kb, kg, kbe = jax.random.split(key, 5)

    # Small shapes implied by the module (NCL Conv1d). L is a multiple of 128
    # so stores are lane-dense and rolls are native lane rotations.
    N, C_in, C_out, L = 2, 8, 8, 128
    x = jax.random.normal(kx, (N, C_in, L), jnp.float32)

    fan = 1.0 / (C_in * 3) ** 0.5
    weight = jax.random.uniform(kw, (C_out, C_in, 3), jnp.float32, -fan, fan)
    bias = jax.random.uniform(kb, (C_out,), jnp.float32, -fan, fan)
    gamma = 1.0 + 0.1 * jax.random.normal(kg, (C_out,), jnp.float32)
    beta = 0.1 * jax.random.normal(kbe, (C_out,), jnp.float32)

    out = conv_block(x, weight, bias, gamma, beta, use_act=True)
    out = jax.block_until_ready(out)

    ref = conv_block_ref(x, weight, bias, gamma, beta, use_act=True)
    assert out.shape == (N, C_out, L)
    assert jnp.allclose(out, ref, atol=2e-3, rtol=2e-3), "mismatch vs reference"

    print("KERNEL_OK")
</pallas_src>

<mosaic_0001>
module attributes {stable_mosaic.version = 11 : i64} {
  func.func @conv_block_kernel(%arg0: i32, %arg1: memref<2x8x128xf32, #tpu.memory_space<vmem>>, %arg2: memref<8x24xf32, #tpu.memory_space<vmem>>, %arg3: memref<8x3xf32, #tpu.memory_space<vmem>>, %arg4: memref<2x8x128xf32, #tpu.memory_space<vmem>>) attributes {dimension_semantics = [#tpu.dimension_semantics<parallel>], iteration_bounds = array<i64: 1>, scalar_prefetch = 0 : i64, scratch_operands = 0 : i64, tpu.core_type = #tpu.core_type<tc>, window_params = [{transform_indices = @transform_0, window_bounds = array<i64: 2, 8, 128>}, {pipeline_mode = #tpu.pipeline_mode<synchronous>, transform_indices = @transform_1, window_bounds = array<i64: 8, 24>}, {pipeline_mode = #tpu.pipeline_mode<synchronous>, transform_indices = @transform_2, window_bounds = array<i64: 8, 3>}, {transform_indices = @transform_3, window_bounds = array<i64: 2, 8, 128>}]} {
    %c0 = arith.constant 0 : index
    %c0_0 = arith.constant 0 : index
    %0 = vector.load %arg2[%c0, %c0_0] : memref<8x24xf32, #tpu.memory_space<vmem>>, vector<8x24xf32>
    %c0_1 = arith.constant 0 : index
    %c0_2 = arith.constant 0 : index
    %1 = vector.load %arg3[%c0_1, %c0_2] : memref<8x3xf32, #tpu.memory_space<vmem>>, vector<8x1xf32>
    %c0_3 = arith.constant 0 : index
    %c1 = arith.constant 1 : index
    %2 = vector.load %arg3[%c0_3, %c1] : memref<8x3xf32, #tpu.memory_space<vmem>>, vector<8x1xf32>
    %c0_4 = arith.constant 0 : index
    %c2 = arith.constant 2 : index
    %3 = vector.load %arg3[%c0_4, %c2] : memref<8x3xf32, #tpu.memory_space<vmem>>, vector<8x1xf32>
    %4 = tpu.iota {dimensions = array<i32: 1>} : vector<8x128xi32>
    %c0_5 = arith.constant 0 : index
    %c0_6 = arith.constant 0 : index
    %c0_7 = arith.constant 0 : index
    %5 = vector.load %arg1[%c0_5, %c0_6, %c0_7] : memref<2x8x128xf32, #tpu.memory_space<vmem>>, vector<1x8x128xf32>
    %6 = vector.shape_cast %5 : vector<1x8x128xf32> to vector<8x128xf32>
    %c0_i32 = arith.constant 0 : i32
    %7 = vector.broadcast %c0_i32 : i32 to vector<8x128xi32>
    %8 = arith.cmpi eq, %4, %7 : vector<8x128xi32>
    %9 = vector.extract_strided_slice %6 {offsets = [0, 1], sizes = [8, 1], strides = [1, 1]} : vector<8x128xf32> to vector<8x1xf32>
    %c1_i32 = arith.constant 1 : i32
    %10 = tpu.dynamic_rotate %6 by %c1_i32 dim 1 : vector<8x128xf32>, i32 -> vector<8x128xf32>
    %11 = vector.shape_cast %9 : vector<8x1xf32> to vector<8x1xf32>
    %12 = vector.broadcast %11 : vector<8x1xf32> to vector<8x128xf32>
    %13 = arith.select %8, %12, %10 : vector<8x128xi1>, vector<8x128xf32>
    %c127_i32 = arith.constant 127 : i32
    %14 = vector.broadcast %c127_i32 : i32 to vector<8x128xi32>
    %15 = arith.cmpi eq, %4, %14 : vector<8x128xi32>
    %16 = vector.extract_strided_slice %6 {offsets = [0, 126], sizes = [8, 1], strides = [1, 1]} : vector<8x128xf32> to vector<8x1xf32>
    %c127_i32_8 = arith.constant 127 : i32
    %17 = tpu.dynamic_rotate %6 by %c127_i32_8 dim 1 : vector<8x128xf32>, i32 -> vector<8x128xf32>
    %18 = vector.shape_cast %16 : vector<8x1xf32> to vector<8x1xf32>
    %19 = vector.broadcast %18 : vector<8x1xf32> to vector<8x128xf32>
    %20 = arith.select %15, %19, %17 : vector<8x128xi1>, vector<8x128xf32>
    %21 = tpu.concatenate %13, %6, %20 in 0 : vector<8x128xf32>, vector<8x128xf32>, vector<8x128xf32> -> vector<24x128xf32>
    %cst = arith.constant dense<0.000000e+00> : vector<8x128xf32>
    %22 = tpu.matmul %0, %21, %cst {dimension_numbers = #tpu.dot_dimension_numbers<[1], [0], [0], [1], [0, 0, 1, 1], [], []>} : vector<8x24xf32>, vector<24x128xf32>, vector<8x128xf32> -> vector<8x128xf32>
    %23 = vector.broadcast %1 : vector<8x1xf32> to vector<8x128xf32>
    %24 = arith.addf %22, %23 : vector<8x128xf32>
    %cst_9 = arith.constant dense<0.000000e+00> : vector<8xf32>
    %25 = vector.multi_reduction <add>, %24, %cst_9 [1] : vector<8x128xf32> to vector<8xf32>
    %26 = vector.shape_cast %25 : vector<8xf32> to vector<8x1xf32>
    %cst_10 = arith.constant 7.812500e-03 : f32
    %27 = vector.broadcast %cst_10 : f32 to vector<8x1xf32>
    %28 = arith.mulf %26, %27 : vector<8x1xf32>
    %29 = arith.mulf %24, %24 : vector<8x128xf32>
    %cst_11 = arith.constant dense<0.000000e+00> : vector<8xf32>
    %30 = vector.multi_reduction <add>, %29, %cst_11 [1] : vector<8x128xf32> to vector<8xf32>
    %31 = vector.shape_cast %30 : vector<8xf32> to vector<8x1xf32>
    %cst_12 = arith.constant 7.812500e-03 : f32
    %32 = vector.broadcast %cst_12 : f32 to vector<8x1xf32>
    %33 = arith.mulf %31, %32 : vector<8x1xf32>
    %34 = arith.mulf %28, %28 : vector<8x1xf32>
    %35 = arith.subf %33, %34 : vector<8x1xf32>
    %cst_13 = arith.constant 0.000000e+00 : f32
    %36 = vector.broadcast %cst_13 : f32 to vector<8x1xf32>
    %37 = arith.maximumf %35, %36 : vector<8x1xf32>
    %cst_14 = arith.constant 9.99999974E-6 : f32
    %38 = vector.broadcast %cst_14 : f32 to vector<8x1xf32>
    %39 = arith.addf %37, %38 : vector<8x1xf32>
    %40 = math.rsqrt %39 : vector<8x1xf32>
    %41 = arith.mulf %40, %2 : vector<8x1xf32>
    %42 = vector.broadcast %28 : vector<8x1xf32> to vector<8x128xf32>
    %43 = arith.subf %24, %42 : vector<8x128xf32>
    %44 = vector.broadcast %41 : vector<8x1xf32> to vector<8x128xf32>
    %45 = arith.mulf %43, %44 : vector<8x128xf32>
    %46 = vector.broadcast %3 : vector<8x1xf32> to vector<8x128xf32>
    %47 = arith.addf %45, %46 : vector<8x128xf32>
    %cst_15 = arith.constant 2.000000e+01 : f32
    %48 = vector.broadcast %cst_15 : f32 to vector<8x128xf32>
    %49 = arith.minimumf %47, %48 : vector<8x128xf32>
    %50 = math.exp %49 : vector<8x128xf32>
    %cst_16 = arith.constant 2.000000e+00 : f32
    %51 = vector.broadcast %cst_16 : f32 to vector<8x128xf32>
    %52 = arith.addf %50, %51 : vector<8x128xf32>
    %53 = arith.mulf %50, %52 : vector<8x128xf32>
    %cst_17 = arith.constant 2.000000e+01 : f32
    %54 = vector.broadcast %cst_17 : f32 to vector<8x128xf32>
    %55 = arith.cmpf ogt, %47, %54 : vector<8x128xf32>
    %cst_18 = arith.constant 2.000000e+00 : f32
    %56 = vector.broadcast %cst_18 : f32 to vector<8x128xf32>
    %57 = arith.addf %53, %56 : vector<8x128xf32>
    %58 = arith.divf %53, %57 : vector<8x128xf32>
    %59 = arith.mulf %47, %58 : vector<8x128xf32>
    %60 = arith.select %55, %47, %59 : vector<8x128xi1>, vector<8x128xf32>
    %c0_19 = arith.constant 0 : index
    %c0_20 = arith.constant 0 : index
    %c0_21 = arith.constant 0 : index
    %61 = vector.load %arg4[%c0_19, %c0_20, %c0_21] : memref<2x8x128xf32, #tpu.memory_space<vmem>>, vector<1x8x128xf32>
    %62 = vector.shape_cast %61 : vector<1x8x128xf32> to vector<8x128xf32>
    %63 = vector.shape_cast %60 : vector<8x128xf32> to vector<1x8x128xf32>
    tpu.vector_store %arg4[%c0_19, %c0_20, %c0_21], %63 {strides = array<i32>} : memref<2x8x128xf32, #tpu.memory_space<vmem>>, vector<1x8x128xf32>,
    %c1_22 = arith.constant 1 : index
    %c0_23 = arith.constant 0 : index
    %c0_24 = arith.constant 0 : index
    %64 = vector.load %arg1[%c1_22, %c0_23, %c0_24] : memref<2x8x128xf32, #tpu.memory_space<vmem>>, vector<1x8x128xf32>
    %65 = vector.shape_cast %64 : vector<1x8x128xf32> to vector<8x128xf32>
    %c0_i32_25 = arith.constant 0 : i32
    %66 = vector.broadcast %c0_i32_25 : i32 to vector<8x128xi32>
    %67 = arith.cmpi eq, %4, %66 : vector<8x128xi32>
    %68 = vector.extract_strided_slice %65 {offsets = [0, 1], sizes = [8, 1], strides = [1, 1]} : vector<8x128xf32> to vector<8x1xf32>
    %c1_i32_26 = arith.constant 1 : i32
    %69 = tpu.dynamic_rotate %65 by %c1_i32_26 dim 1 : vector<8x128xf32>, i32 -> vector<8x128xf32>
    %70 = vector.shape_cast %68 : vector<8x1xf32> to vector<8x1xf32>
    %71 = vector.broadcast %70 : vector<8x1xf32> to vector<8x128xf32>
    %72 = arith.select %67, %71, %69 : vector<8x128xi1>, vector<8x128xf32>
    %c127_i32_27 = arith.constant 127 : i32
    %73 = vector.broadcast %c127_i32_27 : i32 to vector<8x128xi32>
    %74 = arith.cmpi eq, %4, %73 : vector<8x128xi32>
    %75 = vector.extract_strided_slice %65 {offsets = [0, 126], sizes = [8, 1], strides = [1, 1]} : vector<8x128xf32> to vector<8x1xf32>
    %c127_i32_28 = arith.constant 127 : i32
    %76 = tpu.dynamic_rotate %65 by %c127_i32_28 dim 1 : vector<8x128xf32>, i32 -> vector<8x128xf32>
    %77 = vector.shape_cast %75 : vector<8x1xf32> to vector<8x1xf32>
    %78 = vector.broadcast %77 : vector<8x1xf32> to vector<8x128xf32>
    %79 = arith.select %74, %78, %76 : vector<8x128xi1>, vector<8x128xf32>
    %80 = tpu.concatenate %72, %65, %79 in 0 : vector<8x128xf32>, vector<8x128xf32>, vector<8x128xf32> -> vector<24x128xf32>
    %cst_29 = arith.constant dense<0.000000e+00> : vector<8x128xf32>
    %81 = tpu.matmul %0, %80, %cst_29 {dimension_numbers = #tpu.dot_dimension_numbers<[1], [0], [0], [1], [0, 0, 1, 1], [], []>} : vector<8x24xf32>, vector<24x128xf32>, vector<8x128xf32> -> vector<8x128xf32>
    %82 = vector.broadcast %1 : vector<8x1xf32> to vector<8x128xf32>
    %83 = arith.addf %81, %82 : vector<8x128xf32>
    %cst_30 = arith.constant dense<0.000000e+00> : vector<8xf32>
    %84 = vector.multi_reduction <add>, %83, %cst_30 [1] : vector<8x128xf32> to vector<8xf32>
    %85 = vector.shape_cast %84 : vector<8xf32> to vector<8x1xf32>
    %cst_31 = arith.constant 7.812500e-03 : f32
    %86 = vector.broadcast %cst_31 : f32 to vector<8x1xf32>
    %87 = arith.mulf %85, %86 : vector<8x1xf32>
    %88 = arith.mulf %83, %83 : vector<8x128xf32>
    %cst_32 = arith.constant dense<0.000000e+00> : vector<8xf32>
    %89 = vector.multi_reduction <add>, %88, %cst_32 [1] : vector<8x128xf32> to vector<8xf32>
    %90 = vector.shape_cast %89 : vector<8xf32> to vector<8x1xf32>
    %cst_33 = arith.constant 7.812500e-03 : f32
    %91 = vector.broadcast %cst_33 : f32 to vector<8x1xf32>
    %92 = arith.mulf %90, %91 : vector<8x1xf32>
    %93 = arith.mulf %87, %87 : vector<8x1xf32>
    %94 = arith.subf %92, %93 : vector<8x1xf32>
    %cst_34 = arith.constant 0.000000e+00 : f32
    %95 = vector.broadcast %cst_34 : f32 to vector<8x1xf32>
    %96 = arith.maximumf %94, %95 : vector<8x1xf32>
    %cst_35 = arith.constant 9.99999974E-6 : f32
    %97 = vector.broadcast %cst_35 : f32 to vector<8x1xf32>
    %98 = arith.addf %96, %97 : vector<8x1xf32>
    %99 = math.rsqrt %98 : vector<8x1xf32>
    %100 = arith.mulf %99, %2 : vector<8x1xf32>
    %101 = vector.broadcast %87 : vector<8x1xf32> to vector<8x128xf32>
    %102 = arith.subf %83, %101 : vector<8x128xf32>
    %103 = vector.broadcast %100 : vector<8x1xf32> to vector<8x128xf32>
    %104 = arith.mulf %102, %103 : vector<8x128xf32>
    %105 = vector.broadcast %3 : vector<8x1xf32> to vector<8x128xf32>
    %106 = arith.addf %104, %105 : vector<8x128xf32>
    %cst_36 = arith.constant 2.000000e+01 : f32
    %107 = vector.broadcast %cst_36 : f32 to vector<8x128xf32>
    %108 = arith.minimumf %106, %107 : vector<8x128xf32>
    %109 = math.exp %108 : vector<8x128xf32>
    %cst_37 = arith.constant 2.000000e+00 : f32
    %110 = vector.broadcast %cst_37 : f32 to vector<8x128xf32>
    %111 = arith.addf %109, %110 : vector<8x128xf32>
    %112 = arith.mulf %109, %111 : vector<8x128xf32>
    %cst_38 = arith.constant 2.000000e+01 : f32
    %113 = vector.broadcast %cst_38 : f32 to vector<8x128xf32>
    %114 = arith.cmpf ogt, %106, %113 : vector<8x128xf32>
    %cst_39 = arith.constant 2.000000e+00 : f32
    %115 = vector.broadcast %cst_39 : f32 to vector<8x128xf32>
    %116 = arith.addf %112, %115 : vector<8x128xf32>
    %117 = arith.divf %112, %116 : vector<8x128xf32>
    %118 = arith.mulf %106, %117 : vector<8x128xf32>
    %119 = arith.select %114, %106, %118 : vector<8x128xi1>, vector<8x128xf32>
    %c1_40 = arith.constant 1 : index
    %c0_41 = arith.constant 0 : index
    %c0_42 = arith.constant 0 : index
    %120 = vector.load %arg4[%c1_40, %c0_41, %c0_42] : memref<2x8x128xf32, #tpu.memory_space<vmem>>, vector<1x8x128xf32>
    %121 = vector.shape_cast %120 : vector<1x8x128xf32> to vector<8x128xf32>
    %122 = vector.shape_cast %119 : vector<8x128xf32> to vector<1x8x128xf32>
    tpu.vector_store %arg4[%c1_40, %c0_41, %c0_42], %122 {strides = array<i32>} : memref<2x8x128xf32, #tpu.memory_space<vmem>>, vector<1x8x128xf32>,
    return
  }
  func.func @transform_0(%arg0: i32) -> (i32, i32, i32) {
    %c0_i32 = arith.constant 0 : i32
    %c0_i32_0 = arith.constant 0 : i32
    %c0_i32_1 = arith.constant 0 : i32
    return %arg0, %c0_i32, %c0_i32_0 : i32, i32, i32
  }
  func.func @transform_1(%arg0: i32) -> (i32, i32) {
    %c0_i32 = arith.constant 0 : i32
    %c0_i32_0 = arith.constant 0 : i32
    %c0_i32_1 = arith.constant 0 : i32
    return %c0_i32, %c0_i32_0 : i32, i32
  }
  func.func @transform_2(%arg0: i32) -> (i32, i32) {
    %c0_i32 = arith.constant 0 : i32
    %c0_i32_0 = arith.constant 0 : i32
    %c0_i32_1 = arith.constant 0 : i32
    return %c0_i32, %c0_i32_0 : i32, i32
  }
  func.func @transform_3(%arg0: i32) -> (i32, i32, i32) {
    %c0_i32 = arith.constant 0 : i32
    %c0_i32_0 = arith.constant 0 : i32
    %c0_i32_1 = arith.constant 0 : i32
    return %arg0, %c0_i32, %c0_i32_0 : i32, i32, i32
  }
}

</mosaic_0001>

<llo_original>
// kernel: tpu_custom_call.1
$region0: #{tpu_custom_call.1}
  #allocation0 [shape = 'u32[]', space=smem, size = 0x4, offset = 0x4, fixed_abs, tag = 'smem constant byte address 0x4 - core index']
  #allocation1 [shape = 'u32[144,128]{1,0:T(1,128)}', space=vmem, size = 0x12000, scoped, tag = 'internal scratch']
  %s0 = inlined_call_operand.hbm [shape: f32[2,8,128], index: 0, kind: input, shape index: {}]
  %s1 = inlined_call_operand.vmem [shape: f32[8,24], index: 1, kind: input, shape index: {}]
  %s2 = inlined_call_operand.vmem [shape: f32[8,3], index: 2, kind: input, shape index: {}]
  %s3 = inlined_call_operand.hbm [shape: f32[2,8,128], index: 3, kind: output, shape index: {}]
  %s4 = sld [smem:[#allocation0]]
  $region26: #{tpu_custom_call.1} parent=0
    _
  %s6 = ssub.s32 1, %s4
  %s7 = scalar_select 0, %s6, %s4
  $region1: #{tpu_custom_call.1} parent=0
    #allocation2 [shape = 'u8[8192]{0}', space=vmem, size = 0x2000, scoped, tag = 'input window, operand 0, single buffered']
    #allocation3 [shape = 's32[1]{0}', space=sflag, size = 0x4, scoped, tag = 'scoped memory for tpu_custom_call.1']
    #allocation4 [shape = 's32[1]{0}', space=sflag, size = 0x4, scoped, tag = 'scoped memory for tpu_custom_call.1']
    #allocation5 [shape = 'u8[8192]{0}', space=vmem, size = 0x2000, scoped, tag = 'output window, operand 0, single buffered']
    %8 = vsyncpa [#allocation3], 0
    %9 = vsyncpa [#allocation4], 0
    // Predicated region
    $region2: #{tpu_custom_call.1} parent=1 // pred_check
      _
    $region3: #{tpu_custom_call.1} parent=1 // pred_check_branch
      %11 = sbr.rel (0) target = $region5
    $region4: #{tpu_custom_call.1} parent=1 // pred_region
      %s13 = ssub.s32 256, 256
      %14 = vsyncadd [#allocation3], %s13
      %s15 = sshll.u32 [#allocation2], 4
      %s16 = int_to_ptr.vmem [resolvable:$true] %s15
      %21 = dma.hbm_to_vmem [thread:$0]  %s0, 256, %s16, [#allocation3], 128, 128, 8
    $region5: #{tpu_custom_call.1} parent=1 // pred_fallthru
      _
    // Predicated region
    $region6: #{tpu_custom_call.1} parent=1 // pred_check
      _
    $region7: #{tpu_custom_call.1} parent=1 // pred_check_branch
      %23 = sbr.rel (0) target = $region9
    $region8: #{tpu_custom_call.1} parent=1 // pred_region
      _
    $region9: #{tpu_custom_call.1} parent=1 // pred_fallthru
      _
    // Predicated region
    $region10: #{tpu_custom_call.1} parent=1 // pred_check
      _
    $region11: #{tpu_custom_call.1} parent=1 // pred_check_branch
      %25 = sbr.rel (0) target = $region13
    $region12: #{tpu_custom_call.1} parent=1 // pred_region
      _
    $region13: #{tpu_custom_call.1} parent=1 // pred_fallthru
      _
    // Predicated region
    $region14: #{tpu_custom_call.1} parent=1 // pred_check
      _
    $region15: #{tpu_custom_call.1} parent=1 // pred_check_branch
      %27 = sbr.rel (0) target = $region17
    $region16: #{tpu_custom_call.1} parent=1 // pred_region
      %28 = dma.done [#allocation3], 256
    $region17: #{tpu_custom_call.1} parent=1 // pred_fallthru
      _
    %v29 = vld [vmem:[%s1] sm:$0xff]
    %v30 = vld [vmem:[%s2] sm:$0xff]
    %v31 = vlaneseq
    %v32 = vand.u32 %v31, 127
    %v33 = vld [vmem:[#allocation2] sm:$0xff]
    %vm34 = vcmp.eq.s32.totalorder %v32, 0
    %35 = vrot.lane.b32.xlu0 %v33, 1
    %v36 = vpop.permute.xlu0 %35
    %38 = vset.pattern.permute.xlu0 1
    %39 = vperm.xlu0 %38, %v33
    %v40 = vpop.permute.xlu0 %39
    %v42 = vsel %vm34, %v40, %v36
    %vm43 = vcmp.eq.s32.totalorder %v32, 127
    %44 = vrot.lane.b32.xlu0 %v33, 127
    %v45 = vpop.permute.xlu0 %44
    %46 = vset.pattern.permute.xlu0 126
    %47 = vperm.xlu0 %46, %v33
    %v48 = vpop.permute.xlu0 %47
    %v50 = vsel %vm43, %v48, %v45
    %52 = vset.pattern.permute.xlu0 0
    %53 = vperm.xlu0 %52, %v30
    %v54 = vpop.permute.xlu0 %53
    %vm56 = vcmask 195584
    %v58 = vsel %vm56, %v29, 0
    %60 = vmatprep.subr.mxu0 0.0
    %61 = vmatpush1.msra.mxu0 %v42
    %62 = vmatprep.subr.mxu0 0.0
    %63 = vmatpush1.msra.mxu0 %v33
    %64 = vmatprep.subr.mxu0 0.0
    %65 = vmatpush1.msra.mxu0 %v50
    %66 = vmatprep.subr.mxu0 0.0
    %67 = vmatpush1.msra.mxu0 0.0
    %68 = vmatprep.subr.mxu0 0.0
    %69 = vmatpush1.msra.mxu0 0.0
    %70 = vmatprep.subr.mxu0 0.0
    %71 = vmatpush1.msra.mxu0 0.0
    %72 = vmatprep.subr.mxu0 0.0
    %73 = vmatpush1.msra.mxu0 0.0
    %74 = vmatprep.subr.mxu0 0.0
    %75 = vmatpush1.msra.mxu0 0.0
    %76 = vmatprep.subr.mxu0 0.0
    %77 = vmatpush1.msra.mxu0 0.0
    %78 = vmatprep.subr.mxu0 0.0
    %79 = vmatpush1.msra.mxu0 0.0
    %80 = vmatprep.subr.mxu0 0.0
    %81 = vmatpush1.msra.mxu0 0.0
    %82 = vmatprep.subr.mxu0 0.0
    %83 = vmatpush1.msra.mxu0 0.0
    %84 = vmatprep.subr.mxu0 0.0
    %85 = vmatpush1.msra.mxu0 0.0
    %86 = vmatprep.subr.mxu0 0.0
    %87 = vmatpush1.msra.mxu0 0.0
    %88 = vmatprep.subr.mxu0 0.0
    %89 = vmatpush1.msra.mxu0 0.0
    %90 = vmatprep.subr.mxu0 0.0
    %91 = vmatpush1.msra.mxu0 0.0
    %92 = vmatprep.subr.mxu0 0.0
    %93 = vmatpush1.msra.mxu0 0.0
    %94 = vmatprep.subr.mxu0 0.0
    %95 = vmatpush1.msra.mxu0 0.0
    %96 = vmatprep.subr.mxu0 0.0
    %97 = vmatpush1.msra.mxu0 0.0
    %98 = vmatprep.subr.mxu0 0.0
    %99 = vmatpush1.msra.mxu0 0.0
    %100 = vmatprep.subr.mxu0 0.0
    %101 = vmatpush1.msra.mxu0 0.0
    %102 = vmatprep.subr.mxu0 0.0
    %103 = vmatpush1.msra.mxu0 0.0
    %104 = vmatprep.subr.mxu0 0.0
    %105 = vmatpush1.msra.mxu0 0.0
    %106 = vmatprep.subr.mxu0 0.0
    %107 = vmatpush1.msra.mxu0 0.0
    %108 = vmatprep.subr.mxu0 0.0
    %109 = vmatpush1.msra.mxu0 0.0
    %110 = vmatprep.subr.mxu0 0.0
    %111 = vmatpush1.msra.mxu0 0.0
    %112 = vmatprep.subr.mxu0 0.0
    %113 = vmatpush1.msra.mxu0 0.0
    %114 = vmatprep.subr.mxu0 0.0
    %115 = vmatpush1.msra.mxu0 0.0
    %116 = vmatprep.subr.mxu0 0.0
    %117 = vmatpush1.msra.mxu0 0.0
    %118 = vmatprep.subr.mxu0 0.0
    %119 = vmatpush1.msra.mxu0 0.0
    %120 = vmatprep.subr.mxu0 0.0
    %121 = vmatpush1.msra.mxu0 0.0
    %122 = vmatprep.subr.mxu0 0.0
    %123 = vmatpush1.msra.mxu0 0.0
    %124 = vmatprep.mubr.f32.mxu0 0.0
    %125 = vmatmul.mubr.f32.gmra.mrb[0].mxu0 %v58
    %v126 = vpop.f32.mrb[0].mxu0
    %v127 = vadd.f32 %v54, %v126
    %v128 = vpop.f32.mrb[0].mxu0
    %129 = vdwg.mxu0
    %130 = vadd.xlane.f32.xlu0 %v127
    %v131 = vpop.xlane.xlu0 %130
    %v132 = vmul.f32 %v131, 0.0078125
    %v133 = vmul.f32 %v127, %v127
    %134 = vadd.xlane.f32.xlu0 %v133
    %v135 = vpop.xlane.xlu0 %134
    %v136 = vmul.f32 %v135, 0.0078125
    %v137 = vmul.f32 %v132, %v132
    %v138 = vsub.f32 %v136, %v137
    %v139 = vmax.f32 %v138, 0.0
    %v140 = vadd.f32 %v139, 1e-05
    %v141 = vrsqrt.pop %v140
    %v142 = vmul.f32 %v141, %v30
    %v143 = vsub.f32 %v127, %v132
    %145 = vset.pattern.permute.xlu0 1
    %146 = vperm.xlu0 %145, %v142
    %v147 = vpop.permute.xlu0 %146
    %v149 = vmul.f32 %v143, %v147
    %150 = vset.pattern.permute.xlu0 2
    %151 = vperm.xlu0 %150, %v30
    %v152 = vpop.permute.xlu0 %151
    %v154 = vadd.f32 %v149, %v152
    %v155 = vmin.f32 %v154, 20.0
    %v156 = vmul.f32 %v155, 1.442695
    %v157 = vpow.pop %v156
    %v158 = vadd.f32 %v157, 2.0
    %v159 = vmul.f32 %v157, %v158
    %vm160 = vcmp.gt.f32.partialorder %v154, 20.0
    %v161 = vadd.f32 %v159, 2.0
    %v162 = vrcp.pop %v161
    %v163 = vmul.f32 %v159, %v162
    %v164 = vmul.f32 %v154, %v163
    %v165 = vsel %vm160, %v154, %v164
    %166 = vst [vmem:[#allocation5] sm:$0xff] %v165
    %s167 = scalar_lea.vmem [#allocation2], 8
    %v168 = vld [vmem:[%s167] sm:$0xff]
    %169 = vrot.lane.b32.xlu0 %v168, 1
    %v170 = vpop.permute.xlu0 %169
    %172 = vset.pattern.permute.xlu0 1
    %173 = vperm.xlu0 %172, %v168
    %v174 = vpop.permute.xlu0 %173
    %v176 = vsel %vm34, %v174, %v170
    %177 = vrot.lane.b32.xlu0 %v168, 127
    %v178 = vpop.permute.xlu0 %177
    %179 = vset.pattern.permute.xlu0 126
    %180 = vperm.xlu0 %179, %v168
    %v181 = vpop.permute.xlu0 %180
    %v183 = vsel %vm43, %v181, %v178
    %184 = vmatprep.subr.mxu0 0.0
    %185 = vmatpush1.msra.mxu0 %v176
    %186 = vmatprep.subr.mxu0 0.0
    %187 = vmatpush1.msra.mxu0 %v168
    %188 = vmatprep.subr.mxu0 0.0
    %189 = vmatpush1.msra.mxu0 %v183
    %190 = vmatprep.subr.mxu0 0.0
    %191 = vmatpush1.msra.mxu0 0.0
    %192 = vmatprep.subr.mxu0 0.0
    %193 = vmatpush1.msra.mxu0 0.0
    %194 = vmatprep.subr.mxu0 0.0
    %195 = vmatpush1.msra.mxu0 0.0
    %196 = vmatprep.subr.mxu0 0.0
    %197 = vmatpush1.msra.mxu0 0.0
    %198 = vmatprep.subr.mxu0 0.0
    %199 = vmatpush1.msra.mxu0 0.0
    %200 = vmatprep.subr.mxu0 0.0
    %201 = vmatpush1.msra.mxu0 0.0
    %202 = vmatprep.subr.mxu0 0.0
    %203 = vmatpush1.msra.mxu0 0.0
    %204 = vmatprep.subr.mxu0 0.0
    %205 = vmatpush1.msra.mxu0 0.0
    %206 = vmatprep.subr.mxu0 0.0
    %207 = vmatpush1.msra.mxu0 0.0
    %208 = vmatprep.subr.mxu0 0.0
    %209 = vmatpush1.msra.mxu0 0.0
    %210 = vmatprep.subr.mxu0 0.0
    %211 = vmatpush1.msra.mxu0 0.0
    %212 = vmatprep.subr.mxu0 0.0
    %213 = vmatpush1.msra.mxu0 0.0
    %214 = vmatprep.subr.mxu0 0.0
    %215 = vmatpush1.msra.mxu0 0.0
    %216 = vmatprep.subr.mxu0 0.0
    %217 = vmatpush1.msra.mxu0 0.0
    %218 = vmatprep.subr.mxu0 0.0
    %219 = vmatpush1.msra.mxu0 0.0
    %220 = vmatprep.subr.mxu0 0.0
    %221 = vmatpush1.msra.mxu0 0.0
    %222 = vmatprep.subr.mxu0 0.0
    %223 = vmatpush1.msra.mxu0 0.0
    %224 = vmatprep.subr.mxu0 0.0
    %225 = vmatpush1.msra.mxu0 0.0
    %226 = vmatprep.subr.mxu0 0.0
    %227 = vmatpush1.msra.mxu0 0.0
    %228 = vmatprep.subr.mxu0 0.0
    %229 = vmatpush1.msra.mxu0 0.0
    %230 = vmatprep.subr.mxu0 0.0
    %231 = vmatpush1.msra.mxu0 0.0
    %232 = vmatprep.subr.mxu0 0.0
    %233 = vmatpush1.msra.mxu0 0.0
    %234 = vmatprep.subr.mxu0 0.0
    %235 = vmatpush1.msra.mxu0 0.0
    %236 = vmatprep.subr.mxu0 0.0
    %237 = vmatpush1.msra.mxu0 0.0
    %238 = vmatprep.subr.mxu0 0.0
    %239 = vmatpush1.msra.mxu0 0.0
    %240 = vmatprep.subr.mxu0 0.0
    %241 = vmatpush1.msra.mxu0 0.0
    %242 = vmatprep.subr.mxu0 0.0
    %243 = vmatpush1.msra.mxu0 0.0
    %244 = vmatprep.subr.mxu0 0.0
    %245 = vmatpush1.msra.mxu0 0.0
    %246 = vmatprep.subr.mxu0 0.0
    %247 = vmatpush1.msra.mxu0 0.0
    %248 = vmatprep.mubr.f32.mxu0 0.0
    %249 = vmatmul.mubr.f32.gmra.mrb[0].mxu0 %v58
    %v250 = vpop.f32.mrb[0].mxu0
    %v251 = vadd.f32 %v54, %v250
    %v252 = vpop.f32.mrb[0].mxu0
    %253 = vdwg.mxu0
    %254 = vadd.xlane.f32.xlu0 %v251
    %v255 = vpop.xlane.xlu0 %254
    %v256 = vmul.f32 %v255, 0.0078125
    %v257 = vmul.f32 %v251, %v251
    %258 = vadd.xlane.f32.xlu0 %v257
    %v259 = vpop.xlane.xlu0 %258
    %v260 = vmul.f32 %v259, 0.0078125
    %v261 = vmul.f32 %v256, %v256
    %v262 = vsub.f32 %v260, %v261
    %v263 = vmax.f32 %v262, 0.0
    %v264 = vadd.f32 %v263, 1e-05
    %v265 = vrsqrt.pop %v264
    %v266 = vmul.f32 %v265, %v30
    %v267 = vsub.f32 %v251, %v256
    %269 = vset.pattern.permute.xlu0 1
    %270 = vperm.xlu0 %269, %v266
    %v271 = vpop.permute.xlu0 %270
    %v273 = vmul.f32 %v267, %v271
    %v274 = vadd.f32 %v273, %v152
    %v275 = vmin.f32 %v274, 20.0
    %v276 = vmul.f32 %v275, 1.442695
    %v277 = vpow.pop %v276
    %v278 = vadd.f32 %v277, 2.0
    %v279 = vmul.f32 %v277, %v278
    %vm280 = vcmp.gt.f32.partialorder %v274, 20.0
    %v281 = vadd.f32 %v279, 2.0
    %v282 = vrcp.pop %v281
    %v283 = vmul.f32 %v279, %v282
    %v284 = vmul.f32 %v274, %v283
    %v285 = vsel %vm280, %v274, %v284
    %s286 = scalar_lea.vmem [#allocation5], 8
    %287 = vst [vmem:[%s286] sm:$0xff] %v285
    // Predicated region
    $region18: #{tpu_custom_call.1} parent=1 // pred_check
      _
    $region19: #{tpu_custom_call.1} parent=1 // pred_check_branch
      %289 = sbr.rel (0) target = $region21
    $region20: #{tpu_custom_call.1} parent=1 // pred_region
      %s291 = ssub.s32 256, 256
      %292 = vsyncadd [#allocation4], %s291
      %s293 = sshll.u32 [#allocation5], 4
      %s294 = int_to_ptr.vmem [resolvable:$true] %s293
      %299 = dma.vmem_to_hbm [thread:$0]  %s294, 256, %s3, [#allocation4], 128, 128, 8
    $region21: #{tpu_custom_call.1} parent=1 // pred_fallthru
      _
    // Predicated region
    $region22: #{tpu_custom_call.1} parent=1 // pred_check
      _
    $region23: #{tpu_custom_call.1} parent=1 // pred_check_branch
      %301 = sbr.rel (0) target = $region25
    $region24: #{tpu_custom_call.1} parent=1 // pred_region
      %302 = dma.done [#allocation4], 256
    $region25: #{tpu_custom_call.1} parent=1 // pred_fallthru
      _
    %303 = vsyncpa [#allocation3], 1
    %304 = vsyncpa [#allocation4], 1

</llo_original>
